<compile_context>
chip_gen: v7x
topology: tpu7x:2x2x1
jax: 0.10.0
libtpu: 0.0.40
codegen_flags: <defaults>
</compile_context>

<pallas_src>
import functools

import jax
import jax.numpy as jnp
from jax.experimental import pallas as pl
from jax.experimental.pallas import tpu as pltpu


def _fused_head_kernel(x_ref, w_ref, b_ref, o_ref):
    # x_ref: (TILE_B, 14) input rows
    # w_ref: (14, 2) signed-difference fused weights (col k = W[:,k]-W[:,1-k])
    # b_ref: (1, 2)  signed-difference fused bias
    # o_ref: (TILE_B, 2) class probabilities
    z = jnp.dot(x_ref[...], w_ref[...], preferred_element_type=jnp.float32)
    z = z + b_ref[...].astype(jnp.float32)                  # (TILE_B, 2)
    # 2-class softmax == element-wise sigmoid of the logit margin.
    # exp goes to the EUP slot; everything else is VPU — no XLU reductions.
    o_ref[...] = (1.0 / (1.0 + jnp.exp(-z))).astype(o_ref.dtype)


def _round_up(n, m):
    return ((n + m - 1) // m) * m


@functools.partial(jax.jit, static_argnames=("tile_b", "compute_dtype"))
def adults_main_task_forward(x, w1, b1, w2, b2, *, tile_b=None,
                             compute_dtype=jnp.float32):
    """Forward pass of Adults_MainTaskModel.

    x: (B, 14) float32.  w1: (14, 8), b1: (1, 8), w2: (8, 2), b2: (1, 2)
    (weights stored as (in, out), i.e. transposed vs. torch.nn.Linear).
    Returns (B, 2) float32 softmax probabilities.

    compute_dtype=jnp.bfloat16 halves the HBM traffic of the x stream on
    v6e/v7x (accuracy loss is negligible for this logistic head); default is
    exact float32.
    """
    B = x.shape[0]

    # ---- algebraic folding: fc2(fc1(x)) == x @ (w1@w2) + (b1@w2 + b2) ----
    w_fused = w1 @ w2                       # (14, 2)
    b_fused = b1 @ w2 + b2                  # (1, 2)
    # softmax(z)[k] = sigmoid(z_k - z_{1-k}); fold the difference into the
    # weights so the kernel's matmul produces the signed margins directly.
    w_signed = w_fused - w_fused[:, ::-1]   # (14, 2)
    b_signed = b_fused - b_fused[:, ::-1]   # (1, 2)

    if tile_b is None:
        tile_b = min(1024, _round_up(max(B, 1), 8))
    tile_b = max(8, _round_up(tile_b, 8))
    grid = (pl.cdiv(B, tile_b),)

    x_c = x.astype(compute_dtype)
    w_c = w_signed.astype(compute_dtype)
    b_c = b_signed.astype(jnp.float32)

    return pl.pallas_call(
        _fused_head_kernel,
        out_shape=jax.ShapeDtypeStruct((B, 2), jnp.float32),
        grid_spec=pltpu.PrefetchScalarGridSpec(
            num_scalar_prefetch=0,
            grid=grid,
            in_specs=[
                pl.BlockSpec((tile_b, 14), lambda i: (i, 0)),   # x rows
                pl.BlockSpec((14, 2), lambda i: (0, 0)),        # fused W
                pl.BlockSpec((1, 2), lambda i: (0, 0)),         # fused b
            ],
            out_specs=pl.BlockSpec((tile_b, 2), lambda i: (i, 0)),
        ),
        compiler_params=pltpu.CompilerParams(
            dimension_semantics=("parallel",)),   # v7x: shard batch over 2 TCs
    )(x_c, w_c, b_c)


def init_params(key):
    # Deterministic init mimicking torch.nn.Linear default (uniform +-1/sqrt(fan_in)).
    k1, k2, k3, k4 = jax.random.split(key, 4)
    bound1 = 1.0 / jnp.sqrt(14.0)
    bound2 = 1.0 / jnp.sqrt(8.0)
    w1 = jax.random.uniform(k1, (14, 8), jnp.float32, -bound1, bound1)  # (in, out)
    b1 = jax.random.uniform(k2, (1, 8), jnp.float32, -bound1, bound1)
    w2 = jax.random.uniform(k3, (8, 2), jnp.float32, -bound2, bound2)   # (in, out)
    b2 = jax.random.uniform(k4, (1, 2), jnp.float32, -bound2, bound2)
    return w1, b1, w2, b2


if __name__ == "__main__":
    key = jax.random.PRNGKey(0)
    kx, kp, kx2 = jax.random.split(key, 3)
    w1, b1, w2, b2 = init_params(kp)

    def reference(xv):
        # Unfused pure-JAX reference matching the PyTorch module exactly.
        h = xv @ w1 + b1
        logits = h @ w2 + b2
        return jax.nn.softmax(logits, axis=1)

    # Small demo batch (same tiny shape as the original module usage).
    B = 4
    x = jax.random.normal(kx, (B, 14), jnp.float32)
    out = jax.block_until_ready(adults_main_task_forward(x, w1, b1, w2, b2))
    assert out.shape == (B, 2)
    assert jnp.allclose(out, reference(x), atol=1e-5, rtol=1e-5)
    assert jnp.allclose(jnp.sum(out, axis=1), 1.0, atol=1e-5)

    # Larger batch exercising the grid: multiple tiles plus a partial tail tile.
    B2 = 1000
    x2 = jax.random.normal(kx2, (B2, 14), jnp.float32)
    out2 = jax.block_until_ready(
        adults_main_task_forward(x2, w1, b1, w2, b2, tile_b=256))
    assert out2.shape == (B2, 2)
    assert jnp.allclose(out2, reference(x2), atol=1e-5, rtol=1e-5)
    assert jnp.allclose(jnp.sum(out2, axis=1), 1.0, atol=1e-5)

    print("KERNEL_OK")
</pallas_src>

<mosaic_0001>
module attributes {stable_mosaic.version = 11 : i64} {
  func.func @_fused_head_kernel(%arg0: i32, %arg1: memref<8x14xf32, #tpu.memory_space<vmem>>, %arg2: memref<14x2xf32, #tpu.memory_space<vmem>>, %arg3: memref<1x2xf32, #tpu.memory_space<vmem>>, %arg4: memref<8x2xf32, #tpu.memory_space<vmem>>) attributes {dimension_semantics = [#tpu.dimension_semantics<parallel>], iteration_bounds = array<i64: 1>, scalar_prefetch = 0 : i64, scratch_operands = 0 : i64, tpu.core_type = #tpu.core_type<tc>, window_params = [{transform_indices = @transform_0, window_bounds = array<i64: 8, 14>}, {pipeline_mode = #tpu.pipeline_mode<synchronous>, transform_indices = @transform_1, window_bounds = array<i64: 14, 2>}, {pipeline_mode = #tpu.pipeline_mode<synchronous>, transform_indices = @transform_2, window_bounds = array<i64: 1, 2>}, {transform_indices = @transform_3, window_bounds = array<i64: 8, 2>}]} {
    %c0 = arith.constant 0 : index
    %c0_0 = arith.constant 0 : index
    %0 = vector.load %arg1[%c0, %c0_0] : memref<8x14xf32, #tpu.memory_space<vmem>>, vector<8x14xf32>
    %c0_1 = arith.constant 0 : index
    %c0_2 = arith.constant 0 : index
    %1 = vector.load %arg2[%c0_1, %c0_2] : memref<14x2xf32, #tpu.memory_space<vmem>>, vector<14x2xf32>
    %cst = arith.constant dense<0.000000e+00> : vector<8x2xf32>
    %2 = tpu.matmul %0, %1, %cst {dimension_numbers = #tpu.dot_dimension_numbers<[1], [0], [0], [1], [0, 0, 1, 1], [], []>} : vector<8x14xf32>, vector<14x2xf32>, vector<8x2xf32> -> vector<8x2xf32>
    %c0_3 = arith.constant 0 : index
    %c0_4 = arith.constant 0 : index
    %3 = vector.load %arg3[%c0_3, %c0_4] : memref<1x2xf32, #tpu.memory_space<vmem>>, vector<1x2xf32>
    %4 = vector.broadcast %3 : vector<1x2xf32> to vector<8x2xf32>
    %5 = arith.addf %2, %4 : vector<8x2xf32>
    %cst_5 = arith.constant 0.000000e+00 : f32
    %6 = vector.broadcast %cst_5 : f32 to vector<8x2xf32>
    %7 = arith.subf %6, %5 : vector<8x2xf32>
    %8 = math.exp %7 : vector<8x2xf32>
    %cst_6 = arith.constant 1.000000e+00 : f32
    %9 = vector.broadcast %cst_6 : f32 to vector<8x2xf32>
    %10 = arith.addf %9, %8 : vector<8x2xf32>
    %cst_7 = arith.constant 1.000000e+00 : f32
    %11 = vector.broadcast %cst_7 : f32 to vector<8x2xf32>
    %12 = arith.divf %11, %10 : vector<8x2xf32>
    %c0_8 = arith.constant 0 : index
    %c0_9 = arith.constant 0 : index
    %13 = vector.load %arg4[%c0_8, %c0_9] : memref<8x2xf32, #tpu.memory_space<vmem>>, vector<8x2xf32>
    tpu.vector_store %arg4[%c0_8, %c0_9], %12 {strides = array<i32>} : memref<8x2xf32, #tpu.memory_space<vmem>>, vector<8x2xf32>,
    return
  }
  func.func @transform_0(%arg0: i32) -> (i32, i32) {
    %c0_i32 = arith.constant 0 : i32
    %c0_i32_0 = arith.constant 0 : i32
    return %arg0, %c0_i32 : i32, i32
  }
  func.func @transform_1(%arg0: i32) -> (i32, i32) {
    %c0_i32 = arith.constant 0 : i32
    %c0_i32_0 = arith.constant 0 : i32
    %c0_i32_1 = arith.constant 0 : i32
    return %c0_i32, %c0_i32_0 : i32, i32
  }
  func.func @transform_2(%arg0: i32) -> (i32, i32) {
    %c0_i32 = arith.constant 0 : i32
    %c0_i32_0 = arith.constant 0 : i32
    %c0_i32_1 = arith.constant 0 : i32
    return %c0_i32, %c0_i32_0 : i32, i32
  }
  func.func @transform_3(%arg0: i32) -> (i32, i32) {
    %c0_i32 = arith.constant 0 : i32
    %c0_i32_0 = arith.constant 0 : i32
    return %arg0, %c0_i32 : i32, i32
  }
}

</mosaic_0001>

<llo_original>
// kernel: sub.2
$region0: #{sub.2}
  #allocation0 [shape = 's32[1]{0}', space=sflag, size = 0x4, scoped, tag = 'scoped memory for sub.2']
  %s0 = inlined_call_operand.vmem [shape: f32[14,2], index: 0, kind: input, shape index: {}]
  %s1 = inlined_call_operand.vmem [shape: f32[14,2], index: 1, kind: input, shape index: {}]
  %s2 = inlined_call_operand.vmem [shape: f32[14,2], index: 2, kind: output, shape index: {}]
  %v3 = vld [vmem:[%s0] sm:$0xff]
  %v4 = vld [vmem:[%s1] sm:$0xff]
  %5 = xla_tuple %v3, %v4
  %6 = xla_tuple %5
  %v7 = vsub.f32 %v3, %v4
  %8 = xla_tuple %v7
  %9 = vst [vmem:[%s2] sm:$0xff] %v7
  %s10 = scalar_lea.vmem %s0, 8
  %v11 = vld [vmem:[%s10] sm:$0xff]
  %s12 = scalar_lea.vmem %s1, 8
  %v13 = vld [vmem:[%s12] sm:$0xff]
  %14 = xla_tuple %v11, %v13
  %15 = xla_tuple %14
  %v16 = vsub.f32 %v11, %v13
  %17 = xla_tuple %v16
  %s18 = scalar_lea.vmem %s2, 8
  %19 = vst [vmem:[%s18] sm:$0xff] %v16

// kernel: sub.3
$region0: #{sub.3}
  #allocation0 [shape = 's32[1]{0}', space=sflag, size = 0x4, scoped, tag = 'scoped memory for sub.3']
  %s0 = inlined_call_operand.vmem [shape: f32[1,2], index: 0, kind: input, shape index: {}]
  %s1 = inlined_call_operand.vmem [shape: f32[1,2], index: 1, kind: input, shape index: {}]
  %s2 = inlined_call_operand.vmem [shape: f32[1,2], index: 2, kind: output, shape index: {}]
  %v3 = vld [vmem:[%s0] sm:$0x1]
  %v4 = vld [vmem:[%s1] sm:$0x1]
  %5 = xla_tuple %v3, %v4
  %6 = xla_tuple %5
  %v7 = vsub.f32 %v3, %v4
  %8 = xla_tuple %v7
  %9 = vst [vmem:[%s2] sm:$0x1] %v7

// kernel: adults_main_task_forward.1
$region0: #{adults_main_task_forward.1}
  #allocation0 [shape = 'u32[]', space=smem, size = 0x4, offset = 0x4, fixed_abs, tag = 'smem constant byte address 0x4 - core index']
  #allocation1 [shape = 'u32[144,128]{1,0:T(1,128)}', space=vmem, size = 0x12000, scoped, tag = 'internal scratch']
  %s0 = inlined_call_operand.vmem [shape: f32[4,14], index: 0, kind: input, shape index: {}]
  %s1 = inlined_call_operand.vmem [shape: f32[14,2], index: 1, kind: input, shape index: {}]
  %s2 = inlined_call_operand.vmem [shape: f32[1,2], index: 2, kind: input, shape index: {}]
  %s3 = inlined_call_operand.vmem [shape: f32[4,2], index: 3, kind: output, shape index: {}]
  %s4 = sld [smem:[#allocation0]]
  $region52: #{adults_main_task_forward.1} parent=0
    _
  %s6 = ssub.s32 1, %s4
  %s7 = scalar_select 0, %s6, %s4
  $region1: #{adults_main_task_forward.1} parent=0
    #allocation2 [shape = 'u8[4096]{0}', space=vmem, size = 0x1000, scoped, tag = 'output window, operand 0, single buffered']
    // Predicated region
    $region2: #{adults_main_task_forward.1} parent=1 // pred_check
      _
    $region3: #{adults_main_task_forward.1} parent=1 // pred_check_branch
      %9 = sbr.rel (0) target = $region5
    $region4: #{adults_main_task_forward.1} parent=1 // pred_region
      _
    $region5: #{adults_main_task_forward.1} parent=1 // pred_fallthru
      _
    // Predicated region
    $region6: #{adults_main_task_forward.1} parent=1 // pred_check
      _
    $region7: #{adults_main_task_forward.1} parent=1 // pred_check_branch
      %11 = sbr.rel (0) target = $region9
    $region8: #{adults_main_task_forward.1} parent=1 // pred_region
      _
    $region9: #{adults_main_task_forward.1} parent=1 // pred_fallthru
      _
    // Predicated region
    $region10: #{adults_main_task_forward.1} parent=1 // pred_check
      _
    $region11: #{adults_main_task_forward.1} parent=1 // pred_check_branch
      %13 = sbr.rel (0) target = $region13
    $region12: #{adults_main_task_forward.1} parent=1 // pred_region
      _
    $region13: #{adults_main_task_forward.1} parent=1 // pred_fallthru
      _
    %v14 = vld [vmem:[%s0] sm:$0xff]
    %v15 = vld [vmem:[%s1] sm:$0xff]
    %v16 = vld [vmem:[%s1 + $0x8] sm:$0x3f]
    %v17 = vld [vmem:[%s2] sm:$0x1]
    %v19 = vlaneseq
    %v20 = vshrl.u32 %v19, 7
    %v21 = vsub.s32 0, %v20
    %v22 = vrot.slane %v17, %v21
    %vm24 = vcmask 113664
    %v26 = vsel %vm24, %v14, 0
    %vm28 = vcmask 1045504
    %v30 = vsel %vm28, %v16, 0
    %32 = vmatprep.subr.mxu0 0.0
    %33 = vmatpush1.msra.mxu0 %v15
    %34 = vmatprep.subr.mxu0 0.0
    %35 = vmatpush1.msra.mxu0 %v30
    %36 = vmatprep.subr.mxu0 0.0
    %37 = vmatpush1.msra.mxu0 0.0
    %38 = vmatprep.subr.mxu0 0.0
    %39 = vmatpush1.msra.mxu0 0.0
    %40 = vmatprep.subr.mxu0 0.0
    %41 = vmatpush1.msra.mxu0 0.0
    %42 = vmatprep.subr.mxu0 0.0
    %43 = vmatpush1.msra.mxu0 0.0
    %44 = vmatprep.subr.mxu0 0.0
    %45 = vmatpush1.msra.mxu0 0.0
    %46 = vmatprep.subr.mxu0 0.0
    %47 = vmatpush1.msra.mxu0 0.0
    %48 = vmatprep.subr.mxu0 0.0
    %49 = vmatpush1.msra.mxu0 0.0
    %50 = vmatprep.subr.mxu0 0.0
    %51 = vmatpush1.msra.mxu0 0.0
    %52 = vmatprep.subr.mxu0 0.0
    %53 = vmatpush1.msra.mxu0 0.0
    %54 = vmatprep.subr.mxu0 0.0
    %55 = vmatpush1.msra.mxu0 0.0
    %56 = vmatprep.subr.mxu0 0.0
    %57 = vmatpush1.msra.mxu0 0.0
    %58 = vmatprep.subr.mxu0 0.0
    %59 = vmatpush1.msra.mxu0 0.0
    %60 = vmatprep.subr.mxu0 0.0
    %61 = vmatpush1.msra.mxu0 0.0
    %62 = vmatprep.subr.mxu0 0.0
    %63 = vmatpush1.msra.mxu0 0.0
    %64 = vmatprep.subr.mxu0 0.0
    %65 = vmatpush1.msra.mxu0 0.0
    %66 = vmatprep.subr.mxu0 0.0
    %67 = vmatpush1.msra.mxu0 0.0
    %68 = vmatprep.subr.mxu0 0.0
    %69 = vmatpush1.msra.mxu0 0.0
    %70 = vmatprep.subr.mxu0 0.0
    %71 = vmatpush1.msra.mxu0 0.0
    %72 = vmatprep.subr.mxu0 0.0
    %73 = vmatpush1.msra.mxu0 0.0
    %74 = vmatprep.subr.mxu0 0.0
    %75 = vmatpush1.msra.mxu0 0.0
    %76 = vmatprep.subr.mxu0 0.0
    %77 = vmatpush1.msra.mxu0 0.0
    %78 = vmatprep.subr.mxu0 0.0
    %79 = vmatpush1.msra.mxu0 0.0
    %80 = vmatprep.subr.mxu0 0.0
    %81 = vmatpush1.msra.mxu0 0.0
    %82 = vmatprep.subr.mxu0 0.0
    %83 = vmatpush1.msra.mxu0 0.0
    %84 = vmatprep.subr.mxu0 0.0
    %85 = vmatpush1.msra.mxu0 0.0
    %86 = vmatprep.subr.mxu0 0.0
    %87 = vmatpush1.msra.mxu0 0.0
    %88 = vmatprep.subr.mxu0 0.0
    %89 = vmatpush1.msra.mxu0 0.0
    %90 = vmatprep.subr.mxu0 0.0
    %91 = vmatpush1.msra.mxu0 0.0
    %92 = vmatprep.subr.mxu0 0.0
    %93 = vmatpush1.msra.mxu0 0.0
    %94 = vmatprep.subr.mxu0 0.0
    %95 = vmatpush1.msra.mxu0 0.0
    %96 = vmatprep.mubr.f32.mxu0 0.0
    %97 = vmatmul.mubr.f32.gmra.mrb[0].mxu0 %v26
    %v98 = vpop.f32.mrb[0].mxu0
    %v99 = vadd.f32 %v22, %v98
    %v100 = vpop.f32.mrb[0].mxu0
    %101 = vdwg.mxu0
    %v102 = vsub.f32 0.0, %v99
    %v103 = vmul.f32 %v102, 1.442695
    %v104 = vpow.pop %v103
    %v105 = vadd.f32 %v104, 1.0
    %v106 = vrcp.pop %v105
    %v107 = vmul.f32 1.0, %v106
    %vm108 = vcmask 15360
    %109 = vst.msk [vmem:[#allocation2] sm:$0xff] %vm108, %v107
    // Predicated region
    $region14: #{adults_main_task_forward.1} parent=1 // pred_check
      _
    $region15: #{adults_main_task_forward.1} parent=1 // pred_check_branch
      %111 = sbr.rel (0) target = $region17
    $region16: #{adults_main_task_forward.1} parent=1 // pred_region
      // Predicated region
      $region18: #{adults_main_task_forward.1} parent=16 // pred_check
        _
      $region19: #{adults_main_task_forward.1} parent=16 // pred_check_branch
        %113 = sbr.rel (0) target = $region21
      $region20: #{adults_main_task_forward.1} parent=16 // pred_region
        // Predicated region
        $region22: #{adults_main_task_forward.1} parent=20 // pred_check
          _
        $region23: #{adults_main_task_forward.1} parent=20 // pred_check_branch
          %115 = sbr.rel target = $region25
        $region24: #{adults_main_task_forward.1} parent=20 // pred_region
          // Predicated region
          $region37: #{adults_main_task_forward.1} parent=24 // pred_check
            _
          $region38: #{adults_main_task_forward.1} parent=24 // pred_check_branch
            %130 = sbr.rel (0) target = $region40
          $region39: #{adults_main_task_forward.1} parent=24 // pred_region
            loop: start=0, step=1, limit=1
            $region41: #{adults_main_task_forward.1} parent=39 // loop_pre_header
              _
            $region42: #{adults_main_task_forward.1} parent=39 // loop_header
              %s133 = sphi 0, %s137
              %p134 = scmp.ge.s32.totalorder %s133, 1
              %s138 = sphi [#allocation2], [#allocation2]
              %s139 = sphi %s3, %s3
            $region43: #{adults_main_task_forward.1} parent=39 // loop_header_branch
              %136 = sbr.rel (%p134) target = $region47
            $region44: #{adults_main_task_forward.1} parent=39 // loop_body
              %v140 = vld [vmem:[%s138] sm:$0xf]
              %141 = vst [vmem:[%s139] sm:$0xf] %v140
            $region45: #{adults_main_task_forward.1} parent=39 // loop_footer
              %s137 = sadd.s32 1, %s133
            $region46: #{adults_main_task_forward.1} parent=39 // loop_footer_branch
              %132 = sbr.rel target = $region42
            $region47: #{adults_main_task_forward.1} parent=39 // loop_exit
              _
          $region40: #{adults_main_task_forward.1} parent=24 // pred_fallthru
            _
        $region25: #{adults_main_task_forward.1} parent=20 // pred_fallthru
          _
        // Predicated region
        $region26: #{adults_main_task_forward.1} parent=20 // pred_check
          _
        $region27: #{adults_main_task_forward.1} parent=20 // pred_check_branch
          %117 = sbr.rel (0) target = $region29
        $region28: #{adults_main_task_forward.1} parent=20 // pred_region
          loop: start=0, step=1, limit=1
          $region30: #{adults_main_task_forward.1} parent=28 // loop_pre_header
            _
          $region31: #{adults_main_task_forward.1} parent=28 // loop_header
            %s120 = sphi 0, %s124
            %p121 = scmp.ge.s32.totalorder %s120, 1
            %s125 = sphi [#allocation2], [#allocation2]
            %s126 = sphi %s3, %s3
          $region32: #{adults_main_task_forward.1} parent=28 // loop_header_branch
            %123 = sbr.rel (%p121) target = $region36
          $region33: #{adults_main_task_forward.1} parent=28 // loop_body
            %v127 = vld [vmem:[%s125] sm:$0xf]
            %128 = vst [vmem:[%s126] sm:$0xf] %v127
          $region34: #{adults_main_task_forward.1} parent=28 // loop_footer
            %s124 = sadd.s32 1, %s120
          $region35: #{adults_main_task_forward.1} parent=28 // loop_footer_branch
            %119 = sbr.rel target = $region31
          $region36: #{adults_main_task_forward.1} parent=28 // loop_exit
            _
        $region29: #{adults_main_task_forward.1} parent=20 // pred_fallthru
          _
      $region21: #{adults_main_task_forward.1} parent=16 // pred_fallthru
        _
      %142 = vnop
    $region17: #{adults_main_task_forward.1} parent=1 // pred_fallthru
      _
    // Predicated region
    $region48: #{adults_main_task_forward.1} parent=1 // pred_check
      _
    $region49: #{adults_main_task_forward.1} parent=1 // pred_check_branch
      %144 = sbr.rel (0) target = $region51
    $region50: #{adults_main_task_forward.1} parent=1 // pred_region
      _
    $region51: #{adults_main_task_forward.1} parent=1 // pred_fallthru
      _

</llo_original>
